<compile_context>
chip_gen: v6e
topology: v6e:2x2x1
jax: 0.10.0
libtpu: 0.0.40
codegen_flags: <defaults>
</compile_context>

<pallas_src>
import math
import functools

import jax
import jax.numpy as jnp
from jax.experimental import pallas as pl
from jax.experimental.pallas import tpu as pltpu


def mlp_kernel(x_ref,
               w1_ref, b1_ref,
               w2_ref, b2_ref,
               w3_ref, b3_ref,
               w4_ref, b4_ref,
               o_ref):
    """Fused 4-layer MLP on one lane-dense batch tile.

    x_ref:  (1, TB)           batch tile, batch on lanes
    wN_ref: (out_N, in_N)     torch-layout weights (resident in VMEM)
    bN_ref: (out_N, 1)        column biases (broadcast across lanes)
    o_ref:  (1, TB)           output tile
    """
    x = x_ref[...]                                              # (1, TB)

    # Layer 1: in_features == 1 -> VPU broadcast multiply, skip the MXU.
    h = jnp.maximum(w1_ref[...] * x + b1_ref[...], 0.0)         # (5, TB)

    # Layers 2-3: small (out,in) @ (in,TB) matmuls, f32 accumulate, ReLU.
    h = jnp.maximum(
        jnp.dot(w2_ref[...], h, preferred_element_type=jnp.float32)
        + b2_ref[...], 0.0)                                     # (10, TB)
    h = jnp.maximum(
        jnp.dot(w3_ref[...], h, preferred_element_type=jnp.float32)
        + b3_ref[...], 0.0)                                     # (5, TB)

    # Layer 4: final linear, no activation. Lane-dense (1, TB) store.
    o_ref[...] = (jnp.dot(w4_ref[...], h, preferred_element_type=jnp.float32)
                  + b4_ref[...])                                # (1, TB)


@functools.partial(jax.jit, static_argnames=("tb",))
def regression_forward(x, params, *, tb=512):
    """x: (B, 1) float32 (PyTorch layout). Returns (B, 1) float32."""
    B = x.shape[0]
    num_tiles = pl.cdiv(B, tb)
    Bp = num_tiles * tb

    # Batch onto the lane dimension, zero-padded to a multiple of the tile.
    xt = x.reshape(1, B)
    if Bp != B:
        xt = jnp.pad(xt, ((0, 0), (0, Bp - B)))

    w1, b1 = params["w1"], params["b1"]     # (5, 1),  (5, 1)
    w2, b2 = params["w2"], params["b2"]     # (10, 5), (10, 1)
    w3, b3 = params["w3"], params["b3"]     # (5, 10), (5, 1)
    w4, b4 = params["w4"], params["b4"]     # (1, 5),  (1, 1)

    const = lambda i: (0, 0)                # weights/biases: VMEM-resident, one DMA

    out = pl.pallas_call(
        mlp_kernel,
        out_shape=jax.ShapeDtypeStruct((1, Bp), jnp.float32),
        grid_spec=pltpu.PrefetchScalarGridSpec(
            num_scalar_prefetch=0,
            grid=(num_tiles,),
            in_specs=[
                pl.BlockSpec((1, tb), lambda i: (0, i)),   # x tile (lane-dense)
                pl.BlockSpec(w1.shape, const),
                pl.BlockSpec(b1.shape, const),
                pl.BlockSpec(w2.shape, const),
                pl.BlockSpec(b2.shape, const),
                pl.BlockSpec(w3.shape, const),
                pl.BlockSpec(b3.shape, const),
                pl.BlockSpec(w4.shape, const),
                pl.BlockSpec(b4.shape, const),
            ],
            out_specs=pl.BlockSpec((1, tb), lambda i: (0, i)),
        ),
        compiler_params=pltpu.CompilerParams(
            dimension_semantics=("parallel",),   # shard batch tiles across TCs (v7x)
        ),
    )(xt, w1, b1, w2, b2, w3, b3, w4, b4)

    # Drop padded batch columns, back to PyTorch (B, 1) layout.
    return out[:, :B].reshape(B, 1)


def xavier_normal(key, fan_in, fan_out):
    # matches torch.nn.init.xavier_normal_: std = sqrt(2 / (fan_in + fan_out)).
    # Stored in torch layout (out, in); xavier std is symmetric under transpose.
    std = math.sqrt(2.0 / (fan_in + fan_out))
    return std * jax.random.normal(key, (fan_out, fan_in), dtype=jnp.float32)


def init_params(key):
    dims = [(1, 5), (5, 10), (10, 5), (5, 1)]   # (in, out) per layer
    keys = jax.random.split(key, len(dims))
    params = {}
    for i, ((fi, fo), k) in enumerate(zip(dims, keys), start=1):
        params[f"w{i}"] = xavier_normal(k, fi, fo)            # (out, in)
        params[f"b{i}"] = jnp.zeros((fo, 1), dtype=jnp.float32)  # zeros_ init
    return params


def regression_ref(x, params):
    """Pure-JAX reference (PyTorch semantics) for correctness checking."""
    h = jnp.maximum(x @ params["w1"].T + params["b1"].T, 0.0)
    h = jnp.maximum(h @ params["w2"].T + params["b2"].T, 0.0)
    h = jnp.maximum(h @ params["w3"].T + params["b3"].T, 0.0)
    return h @ params["w4"].T + params["b4"].T


if __name__ == "__main__":
    key = jax.random.PRNGKey(0)
    pkey, xkey = jax.random.split(key)

    params = init_params(pkey)
    # Batch of scalar regression inputs, shape (B, 1) like the torch module.
    # B is deliberately not a multiple of the 512-lane tile to exercise padding
    # and a multi-step (2-tile) batch grid; data is still only ~4 KB.
    B = 1000
    x = jax.random.normal(xkey, (B, 1), dtype=jnp.float32)

    out = regression_forward(x, params)
    out = jax.block_until_ready(out)

    ref = regression_ref(x, params)
    assert out.shape == (B, 1), out.shape
    assert jnp.allclose(out, ref, atol=1e-5, rtol=1e-5), (
        float(jnp.max(jnp.abs(out - ref))))

    print("KERNEL_OK")
</pallas_src>

<mosaic_0001>
module attributes {stable_mosaic.version = 11 : i64} {
  func.func @mlp_kernel(%arg0: i32, %arg1: memref<1x512xf32, #tpu.memory_space<vmem>>, %arg2: memref<5x1xf32, #tpu.memory_space<vmem>>, %arg3: memref<5x1xf32, #tpu.memory_space<vmem>>, %arg4: memref<10x5xf32, #tpu.memory_space<vmem>>, %arg5: memref<10x1xf32, #tpu.memory_space<vmem>>, %arg6: memref<5x10xf32, #tpu.memory_space<vmem>>, %arg7: memref<5x1xf32, #tpu.memory_space<vmem>>, %arg8: memref<1x5xf32, #tpu.memory_space<vmem>>, %arg9: memref<1x1xf32, #tpu.memory_space<vmem>>, %arg10: memref<1x512xf32, #tpu.memory_space<vmem>>) attributes {dimension_semantics = [#tpu.dimension_semantics<parallel>], iteration_bounds = array<i64: 2>, scalar_prefetch = 0 : i64, scratch_operands = 0 : i64, tpu.core_type = #tpu.core_type<tc>, window_params = [{transform_indices = @transform_0, window_bounds = array<i64: 1, 512>}, {pipeline_mode = #tpu.pipeline_mode<synchronous>, transform_indices = @transform_1, window_bounds = array<i64: 5, 1>}, {pipeline_mode = #tpu.pipeline_mode<synchronous>, transform_indices = @transform_2, window_bounds = array<i64: 5, 1>}, {pipeline_mode = #tpu.pipeline_mode<synchronous>, transform_indices = @transform_3, window_bounds = array<i64: 10, 5>}, {pipeline_mode = #tpu.pipeline_mode<synchronous>, transform_indices = @transform_4, window_bounds = array<i64: 10, 1>}, {pipeline_mode = #tpu.pipeline_mode<synchronous>, transform_indices = @transform_5, window_bounds = array<i64: 5, 10>}, {pipeline_mode = #tpu.pipeline_mode<synchronous>, transform_indices = @transform_6, window_bounds = array<i64: 5, 1>}, {pipeline_mode = #tpu.pipeline_mode<synchronous>, transform_indices = @transform_7, window_bounds = array<i64: 1, 5>}, {pipeline_mode = #tpu.pipeline_mode<synchronous>, transform_indices = @transform_8, window_bounds = array<i64: 1, 1>}, {transform_indices = @transform_9, window_bounds = array<i64: 1, 512>}]} {
    %c0 = arith.constant 0 : index
    %c0_0 = arith.constant 0 : index
    %0 = vector.load %arg1[%c0, %c0_0] : memref<1x512xf32, #tpu.memory_space<vmem>>, vector<1x512xf32>
    %c0_1 = arith.constant 0 : index
    %c0_2 = arith.constant 0 : index
    %1 = vector.load %arg2[%c0_1, %c0_2] : memref<5x1xf32, #tpu.memory_space<vmem>>, vector<5x1xf32>
    %2 = vector.broadcast %1 : vector<5x1xf32> to vector<5x512xf32>
    %3 = vector.broadcast %0 : vector<1x512xf32> to vector<5x512xf32>
    %4 = arith.mulf %2, %3 : vector<5x512xf32>
    %c0_3 = arith.constant 0 : index
    %c0_4 = arith.constant 0 : index
    %5 = vector.load %arg3[%c0_3, %c0_4] : memref<5x1xf32, #tpu.memory_space<vmem>>, vector<5x1xf32>
    %6 = vector.broadcast %5 : vector<5x1xf32> to vector<5x512xf32>
    %7 = arith.addf %4, %6 : vector<5x512xf32>
    %cst = arith.constant 0.000000e+00 : f32
    %8 = vector.broadcast %cst : f32 to vector<5x512xf32>
    %9 = arith.maximumf %7, %8 : vector<5x512xf32>
    %c0_5 = arith.constant 0 : index
    %c0_6 = arith.constant 0 : index
    %10 = vector.load %arg4[%c0_5, %c0_6] : memref<10x5xf32, #tpu.memory_space<vmem>>, vector<10x5xf32>
    %cst_7 = arith.constant dense<0.000000e+00> : vector<10x512xf32>
    %11 = tpu.matmul %10, %9, %cst_7 {dimension_numbers = #tpu.dot_dimension_numbers<[1], [0], [0], [1], [0, 0, 1, 1], [], []>} : vector<10x5xf32>, vector<5x512xf32>, vector<10x512xf32> -> vector<10x512xf32>
    %c0_8 = arith.constant 0 : index
    %c0_9 = arith.constant 0 : index
    %12 = vector.load %arg5[%c0_8, %c0_9] : memref<10x1xf32, #tpu.memory_space<vmem>>, vector<10x1xf32>
    %13 = vector.broadcast %12 : vector<10x1xf32> to vector<10x512xf32>
    %14 = arith.addf %11, %13 : vector<10x512xf32>
    %cst_10 = arith.constant 0.000000e+00 : f32
    %15 = vector.broadcast %cst_10 : f32 to vector<10x512xf32>
    %16 = arith.maximumf %14, %15 : vector<10x512xf32>
    %c0_11 = arith.constant 0 : index
    %c0_12 = arith.constant 0 : index
    %17 = vector.load %arg6[%c0_11, %c0_12] : memref<5x10xf32, #tpu.memory_space<vmem>>, vector<5x10xf32>
    %cst_13 = arith.constant dense<0.000000e+00> : vector<5x512xf32>
    %18 = tpu.matmul %17, %16, %cst_13 {dimension_numbers = #tpu.dot_dimension_numbers<[1], [0], [0], [1], [0, 0, 1, 1], [], []>} : vector<5x10xf32>, vector<10x512xf32>, vector<5x512xf32> -> vector<5x512xf32>
    %c0_14 = arith.constant 0 : index
    %c0_15 = arith.constant 0 : index
    %19 = vector.load %arg7[%c0_14, %c0_15] : memref<5x1xf32, #tpu.memory_space<vmem>>, vector<5x1xf32>
    %20 = vector.broadcast %19 : vector<5x1xf32> to vector<5x512xf32>
    %21 = arith.addf %18, %20 : vector<5x512xf32>
    %cst_16 = arith.constant 0.000000e+00 : f32
    %22 = vector.broadcast %cst_16 : f32 to vector<5x512xf32>
    %23 = arith.maximumf %21, %22 : vector<5x512xf32>
    %c0_17 = arith.constant 0 : index
    %c0_18 = arith.constant 0 : index
    %24 = vector.load %arg8[%c0_17, %c0_18] : memref<1x5xf32, #tpu.memory_space<vmem>>, vector<1x5xf32>
    %cst_19 = arith.constant dense<0.000000e+00> : vector<1x512xf32>
    %25 = tpu.matmul %24, %23, %cst_19 {dimension_numbers = #tpu.dot_dimension_numbers<[1], [0], [0], [1], [0, 0, 1, 1], [], []>} : vector<1x5xf32>, vector<5x512xf32>, vector<1x512xf32> -> vector<1x512xf32>
    %c0_20 = arith.constant 0 : index
    %c0_21 = arith.constant 0 : index
    %26 = vector.load %arg9[%c0_20, %c0_21] : memref<1x1xf32, #tpu.memory_space<vmem>>, vector<1x1xf32>
    %27 = vector.broadcast %26 : vector<1x1xf32> to vector<1x512xf32>
    %28 = arith.addf %25, %27 : vector<1x512xf32>
    %c0_22 = arith.constant 0 : index
    %c0_23 = arith.constant 0 : index
    %29 = vector.load %arg10[%c0_22, %c0_23] : memref<1x512xf32, #tpu.memory_space<vmem>>, vector<1x512xf32>
    tpu.vector_store %arg10[%c0_22, %c0_23], %28 {strides = array<i32>} : memref<1x512xf32, #tpu.memory_space<vmem>>, vector<1x512xf32>,
    return
  }
  func.func @transform_0(%arg0: i32) -> (i32, i32) {
    %c0_i32 = arith.constant 0 : i32
    %c0_i32_0 = arith.constant 0 : i32
    return %c0_i32, %arg0 : i32, i32
  }
  func.func @transform_1(%arg0: i32) -> (i32, i32) {
    %c0_i32 = arith.constant 0 : i32
    %c0_i32_0 = arith.constant 0 : i32
    %c0_i32_1 = arith.constant 0 : i32
    return %c0_i32, %c0_i32_0 : i32, i32
  }
  func.func @transform_2(%arg0: i32) -> (i32, i32) {
    %c0_i32 = arith.constant 0 : i32
    %c0_i32_0 = arith.constant 0 : i32
    %c0_i32_1 = arith.constant 0 : i32
    return %c0_i32, %c0_i32_0 : i32, i32
  }
  func.func @transform_3(%arg0: i32) -> (i32, i32) {
    %c0_i32 = arith.constant 0 : i32
    %c0_i32_0 = arith.constant 0 : i32
    %c0_i32_1 = arith.constant 0 : i32
    return %c0_i32, %c0_i32_0 : i32, i32
  }
  func.func @transform_4(%arg0: i32) -> (i32, i32) {
    %c0_i32 = arith.constant 0 : i32
    %c0_i32_0 = arith.constant 0 : i32
    %c0_i32_1 = arith.constant 0 : i32
    return %c0_i32, %c0_i32_0 : i32, i32
  }
  func.func @transform_5(%arg0: i32) -> (i32, i32) {
    %c0_i32 = arith.constant 0 : i32
    %c0_i32_0 = arith.constant 0 : i32
    %c0_i32_1 = arith.constant 0 : i32
    return %c0_i32, %c0_i32_0 : i32, i32
  }
  func.func @transform_6(%arg0: i32) -> (i32, i32) {
    %c0_i32 = arith.constant 0 : i32
    %c0_i32_0 = arith.constant 0 : i32
    %c0_i32_1 = arith.constant 0 : i32
    return %c0_i32, %c0_i32_0 : i32, i32
  }
  func.func @transform_7(%arg0: i32) -> (i32, i32) {
    %c0_i32 = arith.constant 0 : i32
    %c0_i32_0 = arith.constant 0 : i32
    %c0_i32_1 = arith.constant 0 : i32
    return %c0_i32, %c0_i32_0 : i32, i32
  }
  func.func @transform_8(%arg0: i32) -> (i32, i32) {
    %c0_i32 = arith.constant 0 : i32
    %c0_i32_0 = arith.constant 0 : i32
    %c0_i32_1 = arith.constant 0 : i32
    return %c0_i32, %c0_i32_0 : i32, i32
  }
  func.func @transform_9(%arg0: i32) -> (i32, i32) {
    %c0_i32 = arith.constant 0 : i32
    %c0_i32_0 = arith.constant 0 : i32
    return %c0_i32, %arg0 : i32, i32
  }
}

</mosaic_0001>

<llo_original>
// kernel: regression_forward.1
$region0: #{regression_forward.1}
  #allocation0 [shape = 'u32[]', space=smem, size = 0x4, offset = 0x4, fixed_abs, tag = 'smem constant byte address 0x4 - core index']
  #allocation1 [shape = 'u32[144,128]{1,0:T(1,128)}', space=vmem, size = 0x12000, scoped, tag = 'internal scratch']
  #allocation2 [shape = 'f32[1,1]{1,0:T(1,128)S(1)}', space=vmem, size = 0x200, scoped, tag = 'scoped memory for regression_forward.1']
  %s0 = inlined_call_operand.vmem [shape: f32[1,1024], index: 0, kind: input, shape index: {}]
  %s1 = inlined_call_operand.vmem [shape: f32[5,1], index: 1, kind: input, shape index: {}]
  %s2 = inlined_call_operand.vmem [shape: f32[5,1], index: 2, kind: input, shape index: {}]
  %s3 = inlined_call_operand.vmem [shape: f32[10,5], index: 3, kind: input, shape index: {}]
  %s4 = inlined_call_operand.vmem [shape: f32[10,1], index: 4, kind: input, shape index: {}]
  %s5 = inlined_call_operand.vmem [shape: f32[5,10], index: 5, kind: input, shape index: {}]
  %s6 = inlined_call_operand.vmem [shape: f32[5,1], index: 6, kind: input, shape index: {}]
  %s7 = inlined_call_operand.vmem [shape: f32[1,5], index: 7, kind: input, shape index: {}]
  %s8 = inlined_call_operand.<no memory space> [shape: f32[1,1], index: 8, kind: input, shape index: {}]
  %s9 = inlined_call_operand.vmem [shape: f32[1,1024], index: 9, kind: output, shape index: {}]
  %s10 = sld [smem:[#allocation0]]
  $region69: #{regression_forward.1} parent=0
    _
  %s12 = ssub.s32 1, %s10
  %s13 = scalar_select 0, %s12, %s10
  %v14 = vstv %s8
  %15 = vst [vmem:[#allocation2] sm:$0x1] %v14
  loop: start=0, step=1, limit=4
  $region2: #{regression_forward.1} parent=0 // loop_pre_header
    _
  $region3: #{regression_forward.1} parent=0 // loop_header
    %s17 = sphi 0, %s21
    %p18 = scmp.ge.s32.totalorder %s17, 4
    %s27 = sphi 0, %s29
    %s30 = sphi 0, %s27
    %s31 = sphi 0, %s30
    %s47 = sphi 0, %s31
    %s51 = sphi 0, %s51
    %s53 = sphi 0, %s51
    %s54 = sphi 0, %s53
    %s68 = sphi 0, %s54
    %s72 = sphi 0, %s72
    %s74 = sphi 0, %s72
    %s75 = sphi 0, %s74
    %s89 = sphi 0, %s75
    %s93 = sphi 0, %s93
    %s95 = sphi 0, %s93
    %s96 = sphi 0, %s95
    %s110 = sphi 0, %s96
    %s114 = sphi 0, %s114
    %s116 = sphi 0, %s114
    %s117 = sphi 0, %s116
    %s131 = sphi 0, %s117
    %s135 = sphi 0, %s135
    %s137 = sphi 0, %s135
    %s138 = sphi 0, %s137
    %s152 = sphi 0, %s138
    %s156 = sphi 0, %s156
    %s158 = sphi 0, %s156
    %s159 = sphi 0, %s158
    %s173 = sphi 0, %s159
    %s177 = sphi 0, %s177
    %s179 = sphi 0, %s177
    %s180 = sphi 0, %s179
    %s194 = sphi 0, %s180
    %s198 = sphi 0, %s198
    %s200 = sphi 0, %s198
    %s201 = sphi 0, %s200
    %s215 = sphi 0, %s201
    %s221 = sphi 0, %s223
    %s224 = sphi 0, %s221
    %s225 = sphi 0, %s224
    %s241 = sphi 0, %s225
  $region4: #{regression_forward.1} parent=0 // loop_header_branch
    %20 = sbr.rel (%p18) target = $region8
  $region5: #{regression_forward.1} parent=0 // loop_body
    %s22 = ssub.s32 %s17, 1
    %s23 = ssub.s32 %s17, 2
    %s24 = sadd.s32 %s17, 1
    %s25 = ssub.s32 %s17, %s24
    %p26 = scmp.eq.s32.totalorder %s25, 0
    %s28 = sadd.s32 %s27, 1
    %s29 = scalar_select %p26, %s27, %s28
    %p32 = pneg %p26
    %p33 = scmp.eq.s32.totalorder %s17, 1
    %p34 = por %p32, %p33
    %p35 = scmp.ne.s32.totalorder %s27, %s30
    %p36 = scmp.eq.s32.totalorder %s17, 0
    %p37 = por %p35, %p36
    %p38 = scmp.ne.s32.totalorder %s27, %s30
    %p39 = scmp.eq.s32.totalorder %s22, 1
    %p40 = por %p38, %p39
    %p41 = scmp.ne.s32.totalorder %s30, %s31
    %p42 = scmp.eq.s32.totalorder %s22, 0
    %p43 = por %p41, %p42
    %p44 = scmp.ne.s32.totalorder %s30, %s31
    %p45 = scmp.eq.s32.totalorder %s23, 1
    %p46 = por %p44, %p45
    %p48 = scmp.ne.s32.totalorder %s31, %s47
    %p49 = scmp.eq.s32.totalorder %s23, 0
    %p50 = por %p48, %p49
    %s52 = sadd.s32 %s51, 1
    %p55 = scmp.eq.s32.totalorder %s17, 1
    %p56 = scmp.ne.s32.totalorder %s51, %s53
    %p57 = scmp.eq.s32.totalorder %s17, 0
    %p58 = por %p56, %p57
    %p59 = scmp.ne.s32.totalorder %s51, %s53
    %p60 = scmp.eq.s32.totalorder %s22, 1
    %p61 = por %p59, %p60
    %p62 = scmp.ne.s32.totalorder %s53, %s54
    %p63 = scmp.eq.s32.totalorder %s22, 0
    %p64 = por %p62, %p63
    %p65 = scmp.ne.s32.totalorder %s53, %s54
    %p66 = scmp.eq.s32.totalorder %s23, 1
    %p67 = por %p65, %p66
    %p69 = scmp.ne.s32.totalorder %s54, %s68
    %p70 = scmp.eq.s32.totalorder %s23, 0
    %p71 = por %p69, %p70
    %s73 = sadd.s32 %s72, 1
    %p76 = scmp.eq.s32.totalorder %s17, 1
    %p77 = scmp.ne.s32.totalorder %s72, %s74
    %p78 = scmp.eq.s32.totalorder %s17, 0
    %p79 = por %p77, %p78
    %p80 = scmp.ne.s32.totalorder %s72, %s74
    %p81 = scmp.eq.s32.totalorder %s22, 1
    %p82 = por %p80, %p81
    %p83 = scmp.ne.s32.totalorder %s74, %s75
    %p84 = scmp.eq.s32.totalorder %s22, 0
    %p85 = por %p83, %p84
    %p86 = scmp.ne.s32.totalorder %s74, %s75
    %p87 = scmp.eq.s32.totalorder %s23, 1
    %p88 = por %p86, %p87
    %p90 = scmp.ne.s32.totalorder %s75, %s89
    %p91 = scmp.eq.s32.totalorder %s23, 0
    %p92 = por %p90, %p91
    %s94 = sadd.s32 %s93, 1
    %p97 = scmp.eq.s32.totalorder %s17, 1
    %p98 = scmp.ne.s32.totalorder %s93, %s95
    %p99 = scmp.eq.s32.totalorder %s17, 0
    %p100 = por %p98, %p99
    %p101 = scmp.ne.s32.totalorder %s93, %s95
    %p102 = scmp.eq.s32.totalorder %s22, 1
    %p103 = por %p101, %p102
    %p104 = scmp.ne.s32.totalorder %s95, %s96
    %p105 = scmp.eq.s32.totalorder %s22, 0
    %p106 = por %p104, %p105
    %p107 = scmp.ne.s32.totalorder %s95, %s96
    %p108 = scmp.eq.s32.totalorder %s23, 1
    %p109 = por %p107, %p108
    %p111 = scmp.ne.s32.totalorder %s96, %s110
    %p112 = scmp.eq.s32.totalorder %s23, 0
    %p113 = por %p111, %p112
    %s115 = sadd.s32 %s114, 1
    %p118 = scmp.eq.s32.totalorder %s17, 1
    %p119 = scmp.ne.s32.totalorder %s114, %s116
    %p120 = scmp.eq.s32.totalorder %s17, 0
    %p121 = por %p119, %p120
    %p122 = scmp.ne.s32.totalorder %s114, %s116
    %p123 = scmp.eq.s32.totalorder %s22, 1
    %p124 = por %p122, %p123
    %p125 = scmp.ne.s32.totalorder %s116, %s117
    %p126 = scmp.eq.s32.totalorder %s22, 0
    %p127 = por %p125, %p126
    %p128 = scmp.ne.s32.totalorder %s116, %s117
    %p129 = scmp.eq.s32.totalorder %s23, 1
    %p130 = por %p128, %p129
    %p132 = scmp.ne.s32.totalorder %s117, %s131
    %p133 = scmp.eq.s32.totalorder %s23, 0
    %p134 = por %p132, %p133
    %s136 = sadd.s32 %s135, 1
    %p139 = scmp.eq.s32.totalorder %s17, 1
    %p140 = scmp.ne.s32.totalorder %s135, %s137
    %p141 = scmp.eq.s32.totalorder %s17, 0
    %p142 = por %p140, %p141
    %p143 = scmp.ne.s32.totalorder %s135, %s137
    %p144 = scmp.eq.s32.totalorder %s22, 1
    %p145 = por %p143, %p144
    %p146 = scmp.ne.s32.totalorder %s137, %s138
    %p147 = scmp.eq.s32.totalorder %s22, 0
    %p148 = por %p146, %p147
    %p149 = scmp.ne.s32.totalorder %s137, %s138
    %p150 = scmp.eq.s32.totalorder %s23, 1
    %p151 = por %p149, %p150
    %p153 = scmp.ne.s32.totalorder %s138, %s152
    %p154 = scmp.eq.s32.totalorder %s23, 0
    %p155 = por %p153, %p154
    %s157 = sadd.s32 %s156, 1
    %p160 = scmp.eq.s32.totalorder %s17, 1
    %p161 = scmp.ne.s32.totalorder %s156, %s158
    %p162 = scmp.eq.s32.totalorder %s17, 0
    %p163 = por %p161, %p162
    %p164 = scmp.ne.s32.totalorder %s156, %s158
    %p165 = scmp.eq.s32.totalorder %s22, 1
    %p166 = por %p164, %p165
    %p167 = scmp.ne.s32.totalorder %s158, %s159
    %p168 = scmp.eq.s32.totalorder %s22, 0
    %p169 = por %p167, %p168
    %p170 = scmp.ne.s32.totalorder %s158, %s159
    %p171 = scmp.eq.s32.totalorder %s23, 1
    %p172 = por %p170, %p171
    %p174 = scmp.ne.s32.totalorder %s159, %s173
    %p175 = scmp.eq.s32.totalorder %s23, 0
    %p176 = por %p174, %p175
    %s178 = sadd.s32 %s177, 1
    %p181 = scmp.eq.s32.totalorder %s17, 1
    %p182 = scmp.ne.s32.totalorder %s177, %s179
    %p183 = scmp.eq.s32.totalorder %s17, 0
    %p184 = por %p182, %p183
    %p185 = scmp.ne.s32.totalorder %s177, %s179
    %p186 = scmp.eq.s32.totalorder %s22, 1
    %p187 = por %p185, %p186
    %p188 = scmp.ne.s32.totalorder %s179, %s180
    %p189 = scmp.eq.s32.totalorder %s22, 0
    %p190 = por %p188, %p189
    %p191 = scmp.ne.s32.totalorder %s179, %s180
    %p192 = scmp.eq.s32.totalorder %s23, 1
    %p193 = por %p191, %p192
    %p195 = scmp.ne.s32.totalorder %s180, %s194
    %p196 = scmp.eq.s32.totalorder %s23, 0
    %p197 = por %p195, %p196
    %s199 = sadd.s32 %s198, 1
    %p202 = scmp.eq.s32.totalorder %s17, 1
    %p203 = scmp.ne.s32.totalorder %s198, %s200
    %p204 = scmp.eq.s32.totalorder %s17, 0
    %p205 = por %p203, %p204
    %p206 = scmp.ne.s32.totalorder %s198, %s200
    %p207 = scmp.eq.s32.totalorder %s22, 1
    %p208 = por %p206, %p207
    %p209 = scmp.ne.s32.totalorder %s200, %s201
    %p210 = scmp.eq.s32.totalorder %s22, 0
    %p211 = por %p209, %p210
    %p212 = scmp.ne.s32.totalorder %s200, %s201
    %p213 = scmp.eq.s32.totalorder %s23, 1
    %p214 = por %p212, %p213
    %p216 = scmp.ne.s32.totalorder %s201, %s215
    %p217 = scmp.eq.s32.totalorder %s23, 0
    %p218 = por %p216, %p217
    %s219 = ssub.s32 %s17, %s24
    %p220 = scmp.eq.s32.totalorder %s219, 0
    %s222 = sadd.s32 %s221, 1
    %s223 = scalar_select %p220, %s221, %s222
    %p226 = pneg %p220
    %p227 = scmp.eq.s32.totalorder %s17, 1
    %p228 = por %p226, %p227
    %p229 = scmp.ne.s32.totalorder %s221, %s224
    %p230 = scmp.eq.s32.totalorder %s17, 0
    %p231 = por %p229, %p230
    %p232 = scmp.ne.s32.totalorder %s221, %s224
    %p233 = scmp.eq.s32.totalorder %s22, 1
    %p234 = por %p232, %p233
    %p235 = scmp.ne.s32.totalorder %s224, %s225
    %p236 = scmp.eq.s32.totalorder %s22, 0
    %p237 = por %p235, %p236
    %p238 = scmp.ne.s32.totalorder %s224, %s225
    %p239 = scmp.eq.s32.totalorder %s23, 1
    %p240 = por %p238, %p239
    %p242 = scmp.ne.s32.totalorder %s225, %s241
    %p243 = scmp.eq.s32.totalorder %s23, 0
    %p244 = por %p242, %p243
    %p245 = scmp.le.s32.totalorder 1, %s17
    %p246 = scmp.lt.s32.totalorder %s17, 3
    %p247 = pnand %p245, %p246
    %p248 = pneg %p247
    // Predicated region
    $region9: #{regression_forward.1} parent=5 // pred_check
      _
    $region10: #{regression_forward.1} parent=5 // pred_check_branch
      %250 = sbr.rel (%p247) target = $region12
    $region11: #{regression_forward.1} parent=5 // pred_region
      %s251 = ssub.s32 %s17, 1
      // Predicated region
      $region13: #{regression_forward.1} parent=11 // pred_check
        %p252 = pneg %p64
      $region14: #{regression_forward.1} parent=11 // pred_check_branch
        %254 = sbr.rel (%p252) target = $region16
      $region15: #{regression_forward.1} parent=11 // pred_region
        _
      $region16: #{regression_forward.1} parent=11 // pred_fallthru
        _
      // Predicated region
      $region17: #{regression_forward.1} parent=11 // pred_check
        %p255 = pneg %p85
      $region18: #{regression_forward.1} parent=11 // pred_check_branch
        %257 = sbr.rel (%p255) target = $region20
      $region19: #{regression_forward.1} parent=11 // pred_region
        _
      $region20: #{regression_forward.1} parent=11 // pred_fallthru
        _
      // Predicated region
      $region21: #{regression_forward.1} parent=11 // pred_check
        %p258 = pneg %p106
      $region22: #{regression_forward.1} parent=11 // pred_check_branch
        %260 = sbr.rel (%p258) target = $region24
      $region23: #{regression_forward.1} parent=11 // pred_region
        _
      $region24: #{regression_forward.1} parent=11 // pred_fallthru
        _
      // Predicated region
      $region25: #{regression_forward.1} parent=11 // pred_check
        %p261 = pneg %p127
      $region26: #{regression_forward.1} parent=11 // pred_check_branch
        %263 = sbr.rel (%p261) target = $region28
      $region27: #{regression_forward.1} parent=11 // pred_region
        _
      $region28: #{regression_forward.1} parent=11 // pred_fallthru
        _
      // Predicated region
      $region29: #{regression_forward.1} parent=11 // pred_check
        %p264 = pneg %p148
      $region30: #{regression_forward.1} parent=11 // pred_check_branch
        %266 = sbr.rel (%p264) target = $region32
      $region31: #{regression_forward.1} parent=11 // pred_region
        _
      $region32: #{regression_forward.1} parent=11 // pred_fallthru
        _
      // Predicated region
      $region33: #{regression_forward.1} parent=11 // pred_check
        %p267 = pneg %p169
      $region34: #{regression_forward.1} parent=11 // pred_check_branch
        %269 = sbr.rel (%p267) target = $region36
      $region35: #{regression_forward.1} parent=11 // pred_region
        _
      $region36: #{regression_forward.1} parent=11 // pred_fallthru
        _
      // Predicated region
      $region37: #{regression_forward.1} parent=11 // pred_check
        %p270 = pneg %p190
      $region38: #{regression_forward.1} parent=11 // pred_check_branch
        %272 = sbr.rel (%p270) target = $region40
      $region39: #{regression_forward.1} parent=11 // pred_region
        _
      $region40: #{regression_forward.1} parent=11 // pred_fallthru
        _
      // Predicated region
      $region41: #{regression_forward.1} parent=11 // pred_check
        %p273 = pneg %p211
      $region42: #{regression_forward.1} parent=11 // pred_check_branch
        %275 = sbr.rel (%p273) target = $region44
      $region43: #{regression_forward.1} parent=11 // pred_region
        _
      $region44: #{regression_forward.1} parent=11 // pred_fallthru
        _
    $region12: #{regression_forward.1} parent=5 // pred_fallthru
      _
    %p276 = scmp.lt.s32.totalorder %s17, 2
    // Predicated region
    $region45: #{regression_forward.1} parent=5 // pred_check
      %p277 = pneg %p276
    $region46: #{regression_forward.1} parent=5 // pred_check_branch
      %279 = sbr.rel (%p277) target = $region48
    $region47: #{regression_forward.1} parent=5 // pred_region
      // Predicated region
      $region49: #{regression_forward.1} parent=47 // pred_check
        %p280 = pneg %p37
      $region50: #{regression_forward.1} parent=47 // pred_check_branch
        %282 = sbr.rel (%p280) target = $region52
      $region51: #{regression_forward.1} parent=47 // pred_region
        %s283 = smul.u32 4, %s17
        %p284 = scmp.lt.s32.totalorder %s283, 7
        %s285 = scalar_select %p284, %s283, 7
        %s286 = scalar_lea.vmem %s0, %s285
        %s287 = smul.u32 4, %s17
      $region52: #{regression_forward.1} parent=47 // pred_fallthru
        _
    $region48: #{regression_forward.1} parent=5 // pred_fallthru
      _
    %p288 = scmp.le.s32.totalorder 1, %s17
    %p289 = scmp.lt.s32.totalorder %s17, 3
    %p290 = pnand %p288, %p289
    %p291 = pneg %p290
    // Predicated region
    $region53: #{regression_forward.1} parent=5 // pred_check
      _
    $region54: #{regression_forward.1} parent=5 // pred_check_branch
      %293 = sbr.rel (%p290) target = $region56
    $region55: #{regression_forward.1} parent=5 // pred_region
      %s294 = ssub.s32 %s17, 1
      %s295 = smul.u32 4, %s22
      %p296 = scmp.lt.s32.totalorder %s295, 7
      %s297 = scalar_select %p296, %s295, 7
      %s298 = scalar_lea.vmem %s0, %s297
      %p299 = pneg %p43
      %p300 = pneg %p40
      %p301 = pneg %p64
      %p302 = pneg %p61
      %p303 = pneg %p85
      %p304 = pneg %p82
      %p305 = pneg %p106
      %p306 = pneg %p103
      %p307 = pneg %p127
      %p308 = pneg %p124
      %p309 = pneg %p148
      %p310 = pneg %p145
      %p311 = pneg %p169
      %p312 = pneg %p166
      %p313 = pneg %p190
      %p314 = pneg %p187
      %p315 = pneg %p211
      %p316 = pneg %p208
      %p317 = pneg %p237
      %p318 = pneg %p234
      %s319 = smul.u32 4, %s22
      %p320 = scmp.lt.s32.totalorder %s319, 7
      %s321 = scalar_select %p320, %s319, 7
      %s322 = scalar_lea.vmem %s9, %s321
      %s323 = smul.u32 4, %s22
      %p324 = scmp.lt.s32.totalorder %s323, 7
      %s325 = scalar_select %p324, %s323, 7
      %s326 = scalar_lea.vmem %s0, %s325
      %s327 = smul.u32 4, %s22
      %s328 = smul.u32 4, %s22
      %p329 = scmp.lt.s32.totalorder %s328, 7
      %s330 = scalar_select %p329, %s328, 7
      %s331 = scalar_lea.vmem %s9, %s330
      %s332 = smul.u32 4, %s22
      %v333 = vld [vmem:[%s326] sm:$0xf]
      %v334 = vld [vmem:[%s1] sm:$0x1f]
      %336 = vset.pattern.permute.xlu0 0
      %337 = vperm.xlu0 %336, %v334
      %v338 = vpop.permute.xlu0 %337
      %v341 = vlaneseq
      %v342 = vshrl.u32 %v341, 7
      %v343 = vsub.s32 0, %v342
      %v344 = vrot.slane %v333, %v343
      %v345 = vlaneseq
      %v346 = vshrl.u32 %v345, 7
      %v347 = vsub.s32 1, %v346
      %v348 = vrot.slane %v333, %v347
      %v349 = vlaneseq
      %v350 = vshrl.u32 %v349, 7
      %v351 = vsub.s32 2, %v350
      %v352 = vrot.slane %v333, %v351
      %v353 = vlaneseq
      %v354 = vshrl.u32 %v353, 7
      %v355 = vsub.s32 3, %v354
      %v356 = vrot.slane %v333, %v355
      %v361 = vmul.f32 %v338, %v344
      %v362 = vmul.f32 %v338, %v348
      %v363 = vmul.f32 %v338, %v352
      %v364 = vmul.f32 %v338, %v356
      %v365 = vld [vmem:[%s2] sm:$0x1f]
      %367 = vset.pattern.permute.xlu0 0
      %368 = vperm.xlu0 %367, %v365
      %v369 = vpop.permute.xlu0 %368
      %v371 = vadd.f32 %v361, %v369
      %v372 = vadd.f32 %v362, %v369
      %v373 = vadd.f32 %v363, %v369
      %v374 = vadd.f32 %v364, %v369
      %v375 = vmax.f32 %v371, 0.0
      %v376 = vmax.f32 %v372, 0.0
      %v377 = vmax.f32 %v373, 0.0
      %v378 = vmax.f32 %v374, 0.0
      %v379 = vld [vmem:[%s3] sm:$0xff]
      %v380 = vld [vmem:[%s3 + $0x8] sm:$0x3]
      %v381 = vld [vmem:[%s4] sm:$0xff]
      %v382 = vld [vmem:[%s4 + $0x8] sm:$0x3]
      %384 = vset.pattern.permute.xlu0 0
      %385 = vperm.xlu0 %384, %v381
      %v386 = vpop.permute.xlu0 %385
      %389 = vset.pattern.permute.xlu0 0
      %390 = vperm.xlu0 %389, %v382
      %v391 = vpop.permute.xlu0 %390
      %vm393 = vcmask 39936
      %v395 = vsel %vm393, %v379, 0
      %v398 = vsel %vm393, %v380, 0
      %vm400 = vcmask 1044480
      %v402 = vsel %vm400, %v375, 0
      %v405 = vsel %vm400, %v376, 0
      %v408 = vsel %vm400, %v377, 0
      %v411 = vsel %vm400, %v378, 0
      %413 = vmatprep.subr.mxu0 0.0
      %414 = vmatpush1.msra.mxu0 0.0
      %415 = vmatprep.subr.mxu0 0.0
      %416 = vmatpush1.msra.mxu0 0.0
      %417 = vmatprep.subr.mxu0 0.0
      %418 = vmatpush1.msra.mxu0 0.0
      %419 = vmatprep.subr.mxu0 0.0
      %420 = vmatpush1.msra.mxu0 0.0
      %421 = vmatprep.subr.mxu0 0.0
      %422 = vmatpush1.msra.mxu0 0.0
      %423 = vmatprep.subr.mxu0 0.0
      %424 = vmatpush1.msra.mxu0 0.0
      %425 = vmatprep.subr.mxu0 0.0
      %426 = vmatpush1.msra.mxu0 0.0
      %427 = vmatprep.subr.mxu0 0.0
      %428 = vmatpush1.msra.mxu0 0.0
      %429 = vmatprep.subr.mxu0 0.0
      %430 = vmatpush1.msra.mxu0 0.0
      %431 = vmatprep.subr.mxu0 0.0
      %432 = vmatpush1.msra.mxu0 0.0
      %433 = vmatprep.subr.mxu0 0.0
      %434 = vmatpush1.msra.mxu0 0.0
      %435 = vmatprep.subr.mxu0 0.0
      %436 = vmatpush1.msra.mxu0 0.0
      %437 = vmatprep.subr.mxu0 0.0
      %438 = vmatpush1.msra.mxu0 0.0
      %439 = vmatprep.subr.mxu0 0.0
      %440 = vmatpush1.msra.mxu0 0.0
      %441 = vmatprep.subr.mxu0 0.0
      %442 = vmatpush1.msra.mxu0 0.0
      %443 = vmatprep.subr.mxu0 %v405
      %444 = vmatpush1.msra.mxu0 %v402
      %445 = vmatprep.subr.mxu0 0.0
      %446 = vmatpush2.msra.mxu0 0.0
      %447 = vmatprep.subr.mxu0 0.0
      %448 = vmatpush2.msra.mxu0 0.0
      %449 = vmatprep.subr.mxu0 0.0
      %450 = vmatpush2.msra.mxu0 0.0
      %451 = vmatprep.subr.mxu0 0.0
      %452 = vmatpush2.msra.mxu0 0.0
      %453 = vmatprep.subr.mxu0 0.0
      %454 = vmatpush2.msra.mxu0 0.0
      %455 = vmatprep.subr.mxu0 0.0
      %456 = vmatpush2.msra.mxu0 0.0
      %457 = vmatprep.subr.mxu0 0.0
      %458 = vmatpush2.msra.mxu0 0.0
      %459 = vmatprep.subr.mxu0 0.0
      %460 = vmatpush2.msra.mxu0 0.0
      %461 = vmatprep.subr.mxu0 0.0
      %462 = vmatpush2.msra.mxu0 0.0
      %463 = vmatprep.subr.mxu0 0.0
      %464 = vmatpush2.msra.mxu0 0.0
      %465 = vmatprep.subr.mxu0 0.0
      %466 = vmatpush2.msra.mxu0 0.0
      %467 = vmatprep.subr.mxu0 0.0
      %468 = vmatpush2.msra.mxu0 0.0
      %469 = vmatprep.subr.mxu0 0.0
      %470 = vmatpush2.msra.mxu0 0.0
      %471 = vmatprep.subr.mxu0 0.0
      %472 = vmatpush2.msra.mxu0 0.0
      %473 = vmatprep.subr.mxu0 0.0
      %474 = vmatpush2.msra.mxu0 0.0
      %475 = vmatprep.subr.mxu0 0.0
      %476 = vmatpush2.msra.mxu0 0.0
      %477 = vmatprep.mubr.f32.mxu0 0.0
      %478 = vmatmul.mubr.f32.gmra.mxu0 %v395
      %v479 = vpop.f32.mrf.mxu0
      %v480 = vadd.f32 %v386, %v479
      %v481 = vpop.f32.mrf.mxu0
      %v482 = vadd.f32 %v386, %v481
      %483 = vmatprep.mubr.f32.mxu0 0.0
      %484 = vmatmul.mubr.f32.gmra.mxu0 %v398
      %v485 = vpop.f32.mrf.mxu0
      %v486 = vadd.f32 %v391, %v485
      %v487 = vpop.f32.mrf.mxu0
      %v488 = vadd.f32 %v391, %v487
      %489 = vdwg.mxu0
      %490 = vmatprep.subr.mxu0 0.0
      %491 = vmatpush1.msra.mxu0 0.0
      %492 = vmatprep.subr.mxu0 0.0
      %493 = vmatpush1.msra.mxu0 0.0
      %494 = vmatprep.subr.mxu0 0.0
      %495 = vmatpush1.msra.mxu0 0.0
      %496 = vmatprep.subr.mxu0 0.0
      %497 = vmatpush1.msra.mxu0 0.0
      %498 = vmatprep.subr.mxu0 0.0
      %499 = vmatpush1.msra.mxu0 0.0
      %500 = vmatprep.subr.mxu0 0.0
      %501 = vmatpush1.msra.mxu0 0.0
      %502 = vmatprep.subr.mxu0 0.0
      %503 = vmatpush1.msra.mxu0 0.0
      %504 = vmatprep.subr.mxu0 0.0
      %505 = vmatpush1.msra.mxu0 0.0
      %506 = vmatprep.subr.mxu0 0.0
      %507 = vmatpush1.msra.mxu0 0.0
      %508 = vmatprep.subr.mxu0 0.0
      %509 = vmatpush1.msra.mxu0 0.0
      %510 = vmatprep.subr.mxu0 0.0
      %511 = vmatpush1.msra.mxu0 0.0
      %512 = vmatprep.subr.mxu0 0.0
      %513 = vmatpush1.msra.mxu0 0.0
      %514 = vmatprep.subr.mxu0 0.0
      %515 = vmatpush1.msra.mxu0 0.0
      %516 = vmatprep.subr.mxu0 0.0
      %517 = vmatpush1.msra.mxu0 0.0
      %518 = vmatprep.subr.mxu0 0.0
      %519 = vmatpush1.msra.mxu0 0.0
      %520 = vmatprep.subr.mxu0 %v411
      %521 = vmatpush1.msra.mxu0 %v408
      %522 = vmatprep.subr.mxu0 0.0
      %523 = vmatpush2.msra.mxu0 0.0
      %524 = vmatprep.subr.mxu0 0.0
      %525 = vmatpush2.msra.mxu0 0.0
      %526 = vmatprep.subr.mxu0 0.0
      %527 = vmatpush2.msra.mxu0 0.0
      %528 = vmatprep.subr.mxu0 0.0
      %529 = vmatpush2.msra.mxu0 0.0
      %530 = vmatprep.subr.mxu0 0.0
      %531 = vmatpush2.msra.mxu0 0.0
      %532 = vmatprep.subr.mxu0 0.0
      %533 = vmatpush2.msra.mxu0 0.0
      %534 = vmatprep.subr.mxu0 0.0
      %535 = vmatpush2.msra.mxu0 0.0
      %536 = vmatprep.subr.mxu0 0.0
      %537 = vmatpush2.msra.mxu0 0.0
      %538 = vmatprep.subr.mxu0 0.0
      %539 = vmatpush2.msra.mxu0 0.0
      %540 = vmatprep.subr.mxu0 0.0
      %541 = vmatpush2.msra.mxu0 0.0
      %542 = vmatprep.subr.mxu0 0.0
      %543 = vmatpush2.msra.mxu0 0.0
      %544 = vmatprep.subr.mxu0 0.0
      %545 = vmatpush2.msra.mxu0 0.0
      %546 = vmatprep.subr.mxu0 0.0
      %547 = vmatpush2.msra.mxu0 0.0
      %548 = vmatprep.subr.mxu0 0.0
      %549 = vmatpush2.msra.mxu0 0.0
      %550 = vmatprep.subr.mxu0 0.0
      %551 = vmatpush2.msra.mxu0 0.0
      %552 = vmatprep.subr.mxu0 0.0
      %553 = vmatpush2.msra.mxu0 0.0
      %554 = vmatprep.mubr.f32.mxu0 0.0
      %555 = vmatmul.mubr.f32.gmra.mxu0 %v395
      %v556 = vpop.f32.mrf.mxu0
      %v557 = vadd.f32 %v386, %v556
      %v558 = vpop.f32.mrf.mxu0
      %v559 = vadd.f32 %v386, %v558
      %560 = vmatprep.mubr.f32.mxu0 0.0
      %561 = vmatmul.mubr.f32.gmra.mxu0 %v398
      %v562 = vpop.f32.mrf.mxu0
      %v563 = vadd.f32 %v391, %v562
      %v564 = vpop.f32.mrf.mxu0
      %v565 = vadd.f32 %v391, %v564
      %566 = vdwg.mxu0
      %v567 = vmax.f32 %v480, 0.0
      %v568 = vmax.f32 %v482, 0.0
      %v569 = vmax.f32 %v557, 0.0
      %v570 = vmax.f32 %v559, 0.0
      %v571 = vmax.f32 %v486, 0.0
      %v572 = vmax.f32 %v488, 0.0
      %v573 = vmax.f32 %v563, 0.0
      %v574 = vmax.f32 %v565, 0.0
      %v575 = vld [vmem:[%s5] sm:$0x1f]
      %v576 = vld [vmem:[%s6] sm:$0x1f]
      %578 = vset.pattern.permute.xlu0 0
      %579 = vperm.xlu0 %578, %v576
      %v580 = vpop.permute.xlu0 %579
      %vm582 = vcmask 80896
      %v584 = vsel %vm582, %v575, 0
      %vm586 = vcmask 1041408
      %v588 = vsel %vm586, %v571, 0
      %v591 = vsel %vm586, %v572, 0
      %v594 = vsel %vm586, %v573, 0
      %v597 = vsel %vm586, %v574, 0
      %599 = vmatprep.subr.mxu0 0.0
      %600 = vmatpush1.msra.mxu0 0.0
      %601 = vmatprep.subr.mxu0 0.0
      %602 = vmatpush1.msra.mxu0 0.0
      %603 = vmatprep.subr.mxu0 0.0
      %604 = vmatpush1.msra.mxu0 0.0
      %605 = vmatprep.subr.mxu0 0.0
      %606 = vmatpush1.msra.mxu0 0.0
      %607 = vmatprep.subr.mxu0 0.0
      %608 = vmatpush1.msra.mxu0 0.0
      %609 = vmatprep.subr.mxu0 0.0
      %610 = vmatpush1.msra.mxu0 0.0
      %611 = vmatprep.subr.mxu0 0.0
      %612 = vmatpush1.msra.mxu0 0.0
      %613 = vmatprep.subr.mxu0 0.0
      %614 = vmatpush1.msra.mxu0 0.0
      %615 = vmatprep.subr.mxu0 0.0
      %616 = vmatpush1.msra.mxu0 0.0
      %617 = vmatprep.subr.mxu0 0.0
      %618 = vmatpush1.msra.mxu0 0.0
      %619 = vmatprep.subr.mxu0 0.0
      %620 = vmatpush1.msra.mxu0 0.0
      %621 = vmatprep.subr.mxu0 0.0
      %622 = vmatpush1.msra.mxu0 0.0
      %623 = vmatprep.subr.mxu0 0.0
      %624 = vmatpush1.msra.mxu0 0.0
      %625 = vmatprep.subr.mxu0 0.0
      %626 = vmatpush1.msra.mxu0 0.0
      %627 = vmatprep.subr.mxu0 %v591
      %628 = vmatpush1.msra.mxu0 %v588
      %629 = vmatprep.subr.mxu0 %v568
      %630 = vmatpush1.msra.mxu0 %v567
      %631 = vmatprep.subr.mxu0 0.0
      %632 = vmatpush2.msra.mxu0 0.0
      %633 = vmatprep.subr.mxu0 0.0
      %634 = vmatpush2.msra.mxu0 0.0
      %635 = vmatprep.subr.mxu0 0.0
      %636 = vmatpush2.msra.mxu0 0.0
      %637 = vmatprep.subr.mxu0 0.0
      %638 = vmatpush2.msra.mxu0 0.0
      %639 = vmatprep.subr.mxu0 0.0
      %640 = vmatpush2.msra.mxu0 0.0
      %641 = vmatprep.subr.mxu0 0.0
      %642 = vmatpush2.msra.mxu0 0.0
      %643 = vmatprep.subr.mxu0 0.0
      %644 = vmatpush2.msra.mxu0 0.0
      %645 = vmatprep.subr.mxu0 0.0
      %646 = vmatpush2.msra.mxu0 0.0
      %647 = vmatprep.subr.mxu0 0.0
      %648 = vmatpush2.msra.mxu0 0.0
      %649 = vmatprep.subr.mxu0 0.0
      %650 = vmatpush2.msra.mxu0 0.0
      %651 = vmatprep.subr.mxu0 0.0
      %652 = vmatpush2.msra.mxu0 0.0
      %653 = vmatprep.subr.mxu0 0.0
      %654 = vmatpush2.msra.mxu0 0.0
      %655 = vmatprep.subr.mxu0 0.0
      %656 = vmatpush2.msra.mxu0 0.0
      %657 = vmatprep.subr.mxu0 0.0
      %658 = vmatpush2.msra.mxu0 0.0
      %659 = vmatprep.subr.mxu0 0.0
      %660 = vmatpush2.msra.mxu0 0.0
      %661 = vmatprep.subr.mxu0 0.0
      %662 = vmatpush2.msra.mxu0 0.0
      %663 = vmatprep.mubr.f32.mxu0 0.0
      %664 = vmatmul.mubr.f32.gmra.mxu0 %v584
      %v665 = vpop.f32.mrf.mxu0
      %v666 = vadd.f32 %v580, %v665
      %v667 = vpop.f32.mrf.mxu0
      %v668 = vadd.f32 %v580, %v667
      %669 = vdwg.mxu0
      %670 = vmatprep.subr.mxu0 0.0
      %671 = vmatpush1.msra.mxu0 0.0
      %672 = vmatprep.subr.mxu0 0.0
      %673 = vmatpush1.msra.mxu0 0.0
      %674 = vmatprep.subr.mxu0 0.0
      %675 = vmatpush1.msra.mxu0 0.0
      %676 = vmatprep.subr.mxu0 0.0
      %677 = vmatpush1.msra.mxu0 0.0
      %678 = vmatprep.subr.mxu0 0.0
      %679 = vmatpush1.msra.mxu0 0.0
      %680 = vmatprep.subr.mxu0 0.0
      %681 = vmatpush1.msra.mxu0 0.0
      %682 = vmatprep.subr.mxu0 0.0
      %683 = vmatpush1.msra.mxu0 0.0
      %684 = vmatprep.subr.mxu0 0.0
      %685 = vmatpush1.msra.mxu0 0.0
      %686 = vmatprep.subr.mxu0 0.0
      %687 = vmatpush1.msra.mxu0 0.0
      %688 = vmatprep.subr.mxu0 0.0
      %689 = vmatpush1.msra.mxu0 0.0
      %690 = vmatprep.subr.mxu0 0.0
      %691 = vmatpush1.msra.mxu0 0.0
      %692 = vmatprep.subr.mxu0 0.0
      %693 = vmatpush1.msra.mxu0 0.0
      %694 = vmatprep.subr.mxu0 0.0
      %695 = vmatpush1.msra.mxu0 0.0
      %696 = vmatprep.subr.mxu0 0.0
      %697 = vmatpush1.msra.mxu0 0.0
      %698 = vmatprep.subr.mxu0 %v597
      %699 = vmatpush1.msra.mxu0 %v594
      %700 = vmatprep.subr.mxu0 %v570
      %701 = vmatpush1.msra.mxu0 %v569
      %702 = vmatprep.subr.mxu0 0.0
      %703 = vmatpush2.msra.mxu0 0.0
      %704 = vmatprep.subr.mxu0 0.0
      %705 = vmatpush2.msra.mxu0 0.0
      %706 = vmatprep.subr.mxu0 0.0
      %707 = vmatpush2.msra.mxu0 0.0
      %708 = vmatprep.subr.mxu0 0.0
      %709 = vmatpush2.msra.mxu0 0.0
      %710 = vmatprep.subr.mxu0 0.0
      %711 = vmatpush2.msra.mxu0 0.0
      %712 = vmatprep.subr.mxu0 0.0
      %713 = vmatpush2.msra.mxu0 0.0
      %714 = vmatprep.subr.mxu0 0.0
      %715 = vmatpush2.msra.mxu0 0.0
      %716 = vmatprep.subr.mxu0 0.0
      %717 = vmatpush2.msra.mxu0 0.0
      %718 = vmatprep.subr.mxu0 0.0
      %719 = vmatpush2.msra.mxu0 0.0
      %720 = vmatprep.subr.mxu0 0.0
      %721 = vmatpush2.msra.mxu0 0.0
      %722 = vmatprep.subr.mxu0 0.0
      %723 = vmatpush2.msra.mxu0 0.0
      %724 = vmatprep.subr.mxu0 0.0
      %725 = vmatpush2.msra.mxu0 0.0
      %726 = vmatprep.subr.mxu0 0.0
      %727 = vmatpush2.msra.mxu0 0.0
      %728 = vmatprep.subr.mxu0 0.0
      %729 = vmatpush2.msra.mxu0 0.0
      %730 = vmatprep.subr.mxu0 0.0
      %731 = vmatpush2.msra.mxu0 0.0
      %732 = vmatprep.subr.mxu0 0.0
      %733 = vmatpush2.msra.mxu0 0.0
      %734 = vmatprep.mubr.f32.mxu0 0.0
      %735 = vmatmul.mubr.f32.gmra.mxu0 %v584
      %v736 = vpop.f32.mrf.mxu0
      %v737 = vadd.f32 %v580, %v736
      %v738 = vpop.f32.mrf.mxu0
      %v739 = vadd.f32 %v580, %v738
      %740 = vdwg.mxu0
      %v741 = vmax.f32 %v666, 0.0
      %v742 = vmax.f32 %v668, 0.0
      %v743 = vmax.f32 %v737, 0.0
      %v744 = vmax.f32 %v739, 0.0
      %v745 = vld [vmem:[%s7] sm:$0x1]
      %v746 = vld [vmem:[#allocation2] sm:$0x1]
      %748 = vset.pattern.permute.xlu0 0
      %749 = vperm.xlu0 %748, %v746
      %v750 = vpop.permute.xlu0 %749
      %v752 = vlaneseq
      %v753 = vshrl.u32 %v752, 7
      %v754 = vsub.s32 0, %v753
      %v755 = vrot.slane %v750, %v754
      %v757 = vsel %vm393, %v745, 0
      %v760 = vsel %vm400, %v741, 0
      %v763 = vsel %vm400, %v742, 0
      %v766 = vsel %vm400, %v743, 0
      %v769 = vsel %vm400, %v744, 0
      %771 = vmatprep.subr.mxu0 0.0
      %772 = vmatpush1.msra.mxu0 0.0
      %773 = vmatprep.subr.mxu0 0.0
      %774 = vmatpush1.msra.mxu0 0.0
      %775 = vmatprep.subr.mxu0 0.0
      %776 = vmatpush1.msra.mxu0 0.0
      %777 = vmatprep.subr.mxu0 0.0
      %778 = vmatpush1.msra.mxu0 0.0
      %779 = vmatprep.subr.mxu0 0.0
      %780 = vmatpush1.msra.mxu0 0.0
      %781 = vmatprep.subr.mxu0 0.0
      %782 = vmatpush1.msra.mxu0 0.0
      %783 = vmatprep.subr.mxu0 0.0
      %784 = vmatpush1.msra.mxu0 0.0
      %785 = vmatprep.subr.mxu0 0.0
      %786 = vmatpush1.msra.mxu0 0.0
      %787 = vmatprep.subr.mxu0 0.0
      %788 = vmatpush1.msra.mxu0 0.0
      %789 = vmatprep.subr.mxu0 0.0
      %790 = vmatpush1.msra.mxu0 0.0
      %791 = vmatprep.subr.mxu0 0.0
      %792 = vmatpush1.msra.mxu0 0.0
      %793 = vmatprep.subr.mxu0 0.0
      %794 = vmatpush1.msra.mxu0 0.0
      %795 = vmatprep.subr.mxu0 0.0
      %796 = vmatpush1.msra.mxu0 0.0
      %797 = vmatprep.subr.mxu0 0.0
      %798 = vmatpush1.msra.mxu0 0.0
      %799 = vmatprep.subr.mxu0 0.0
      %800 = vmatpush1.msra.mxu0 0.0
      %801 = vmatprep.subr.mxu0 %v763
      %802 = vmatpush1.msra.mxu0 %v760
      %803 = vmatprep.subr.mxu0 0.0
      %804 = vmatpush2.msra.mxu0 0.0
      %805 = vmatprep.subr.mxu0 0.0
      %806 = vmatpush2.msra.mxu0 0.0
      %807 = vmatprep.subr.mxu0 0.0
      %808 = vmatpush2.msra.mxu0 0.0
      %809 = vmatprep.subr.mxu0 0.0
      %810 = vmatpush2.msra.mxu0 0.0
      %811 = vmatprep.subr.mxu0 0.0
      %812 = vmatpush2.msra.mxu0 0.0
      %813 = vmatprep.subr.mxu0 0.0
      %814 = vmatpush2.msra.mxu0 0.0
      %815 = vmatprep.subr.mxu0 0.0
      %816 = vmatpush2.msra.mxu0 0.0
      %817 = vmatprep.subr.mxu0 0.0
      %818 = vmatpush2.msra.mxu0 0.0
      %819 = vmatprep.subr.mxu0 0.0
      %820 = vmatpush2.msra.mxu0 0.0
      %821 = vmatprep.subr.mxu0 0.0
      %822 = vmatpush2.msra.mxu0 0.0
      %823 = vmatprep.subr.mxu0 0.0
      %824 = vmatpush2.msra.mxu0 0.0
      %825 = vmatprep.subr.mxu0 0.0
      %826 = vmatpush2.msra.mxu0 0.0
      %827 = vmatprep.subr.mxu0 0.0
      %828 = vmatpush2.msra.mxu0 0.0
      %829 = vmatprep.subr.mxu0 0.0
      %830 = vmatpush2.msra.mxu0 0.0
      %831 = vmatprep.subr.mxu0 0.0
      %832 = vmatpush2.msra.mxu0 0.0
      %833 = vmatprep.subr.mxu0 0.0
      %834 = vmatpush2.msra.mxu0 0.0
      %835 = vmatprep.mubr.f32.mxu0 0.0
      %836 = vmatmul.mubr.f32.gmra.mxu0 %v757
      %v837 = vpop.f32.mrf.mxu0
      %v838 = vadd.f32 %v755, %v837
      %v839 = vpop.f32.mrf.mxu0
      %v840 = vadd.f32 %v755, %v839
      %841 = vdwg.mxu0
      %842 = vmatprep.subr.mxu0 0.0
      %843 = vmatpush1.msra.mxu0 0.0
      %844 = vmatprep.subr.mxu0 0.0
      %845 = vmatpush1.msra.mxu0 0.0
      %846 = vmatprep.subr.mxu0 0.0
      %847 = vmatpush1.msra.mxu0 0.0
      %848 = vmatprep.subr.mxu0 0.0
      %849 = vmatpush1.msra.mxu0 0.0
      %850 = vmatprep.subr.mxu0 0.0
      %851 = vmatpush1.msra.mxu0 0.0
      %852 = vmatprep.subr.mxu0 0.0
      %853 = vmatpush1.msra.mxu0 0.0
      %854 = vmatprep.subr.mxu0 0.0
      %855 = vmatpush1.msra.mxu0 0.0
      %856 = vmatprep.subr.mxu0 0.0
      %857 = vmatpush1.msra.mxu0 0.0
      %858 = vmatprep.subr.mxu0 0.0
      %859 = vmatpush1.msra.mxu0 0.0
      %860 = vmatprep.subr.mxu0 0.0
      %861 = vmatpush1.msra.mxu0 0.0
      %862 = vmatprep.subr.mxu0 0.0
      %863 = vmatpush1.msra.mxu0 0.0
      %864 = vmatprep.subr.mxu0 0.0
      %865 = vmatpush1.msra.mxu0 0.0
      %866 = vmatprep.subr.mxu0 0.0
      %867 = vmatpush1.msra.mxu0 0.0
      %868 = vmatprep.subr.mxu0 0.0
      %869 = vmatpush1.msra.mxu0 0.0
      %870 = vmatprep.subr.mxu0 0.0
      %871 = vmatpush1.msra.mxu0 0.0
      %872 = vmatprep.subr.mxu0 %v769
      %873 = vmatpush1.msra.mxu0 %v766
      %874 = vmatprep.subr.mxu0 0.0
      %875 = vmatpush2.msra.mxu0 0.0
      %876 = vmatprep.subr.mxu0 0.0
      %877 = vmatpush2.msra.mxu0 0.0
      %878 = vmatprep.subr.mxu0 0.0
      %879 = vmatpush2.msra.mxu0 0.0
      %880 = vmatprep.subr.mxu0 0.0
      %881 = vmatpush2.msra.mxu0 0.0
      %882 = vmatprep.subr.mxu0 0.0
      %883 = vmatpush2.msra.mxu0 0.0
      %884 = vmatprep.subr.mxu0 0.0
      %885 = vmatpush2.msra.mxu0 0.0
      %886 = vmatprep.subr.mxu0 0.0
      %887 = vmatpush2.msra.mxu0 0.0
      %888 = vmatprep.subr.mxu0 0.0
      %889 = vmatpush2.msra.mxu0 0.0
      %890 = vmatprep.subr.mxu0 0.0
      %891 = vmatpush2.msra.mxu0 0.0
      %892 = vmatprep.subr.mxu0 0.0
      %893 = vmatpush2.msra.mxu0 0.0
      %894 = vmatprep.subr.mxu0 0.0
      %895 = vmatpush2.msra.mxu0 0.0
      %896 = vmatprep.subr.mxu0 0.0
      %897 = vmatpush2.msra.mxu0 0.0
      %898 = vmatprep.subr.mxu0 0.0
      %899 = vmatpush2.msra.mxu0 0.0
      %900 = vmatprep.subr.mxu0 0.0
      %901 = vmatpush2.msra.mxu0 0.0
      %902 = vmatprep.subr.mxu0 0.0
      %903 = vmatpush2.msra.mxu0 0.0
      %904 = vmatprep.subr.mxu0 0.0
      %905 = vmatpush2.msra.mxu0 0.0
      %906 = vmatprep.mubr.f32.mxu0 0.0
      %907 = vmatmul.mubr.f32.gmra.mxu0 %v757
      %v908 = vpop.f32.mrf.mxu0
      %v909 = vadd.f32 %v755, %v908
      %v910 = vpop.f32.mrf.mxu0
      %v911 = vadd.f32 %v755, %v910
      %912 = vdwg.mxu0
      %v917 = vcombine.low %v838, %v840
      %v918 = vcombine.low %v909, %v911
      %v920 = vunpack.c.l.s4 1966171168
      %v921 = vunpack.c.0.s8 %v920
      %v922 = vlaneseq
      %v923 = vshrl.u32 %v922, 7
      %v924 = vsub.s32 %v921, %v923
      %v925 = vrot.slane %v917, %v924
      %v927 = vunpack.c.l.s4 1966171168
      %v928 = vunpack.c.0.s8 %v927
      %v929 = vlaneseq
      %v930 = vshrl.u32 %v929, 7
      %v931 = vsub.s32 %v928, %v930
      %v932 = vrot.slane %v918, %v931
      %v933 = vcombine.low %v925, %v932
      %v935 = vunpack.c.l.s4 1966171168
      %v936 = vunpack.c.0.s8 %v935
      %v937 = vlaneseq
      %v938 = vshrl.u32 %v937, 7
      %v939 = vsub.s32 %v936, %v938
      %v940 = vrot.slane %v933, %v939
      %v942 = vlaneseq
      %vm943 = vcmp.ge.s32.totalorder %v942, 0
      %vm944 = vcmp.lt.s32.totalorder %v942, 512
      %vm945 = vmand %vm943, %vm944
      %946 = vst.msk [vmem:[%s331] sm:$0xf] %vm945, %v940
      %s947 = smul.u32 4, %s22
      %p948 = scmp.lt.s32.totalorder %s947, 7
      %s949 = scalar_select %p948, %s947, 7
      %s950 = scalar_lea.vmem %s9, %s949
      // Predicated region
      $region57: #{regression_forward.1} parent=55 // pred_check
        %p951 = pneg %p234
      $region58: #{regression_forward.1} parent=55 // pred_check_branch
        %953 = sbr.rel (%p951) target = $region60
      $region59: #{regression_forward.1} parent=55 // pred_region
        %s954 = smul.u32 4, %s22
      $region60: #{regression_forward.1} parent=55 // pred_fallthru
        _
    $region56: #{regression_forward.1} parent=5 // pred_fallthru
      _
    %p955 = scmp.le.s32.totalorder 2, %s17
    // Predicated region
    $region61: #{regression_forward.1} parent=5 // pred_check
      %p956 = pneg %p955
    $region62: #{regression_forward.1} parent=5 // pred_check_branch
      %958 = sbr.rel (%p956) target = $region64
    $region63: #{regression_forward.1} parent=5 // pred_region
      %s959 = ssub.s32 %s17, 2
      // Predicated region
      $region65: #{regression_forward.1} parent=63 // pred_check
        %p960 = pneg %p240
      $region66: #{regression_forward.1} parent=63 // pred_check_branch
        %962 = sbr.rel (%p960) target = $region68
      $region67: #{regression_forward.1} parent=63 // pred_region
        %s963 = smul.u32 4, %s23
        %p964 = scmp.lt.s32.totalorder %s963, 7
        %s965 = scalar_select %p964, %s963, 7
        %s966 = scalar_lea.vmem %s9, %s965
      $region68: #{regression_forward.1} parent=63 // pred_fallthru
        _
    $region64: #{regression_forward.1} parent=5 // pred_fallthru
      _
  $region6: #{regression_forward.1} parent=0 // loop_footer
    %s21 = sadd.s32 1, %s17
  $region7: #{regression_forward.1} parent=0 // loop_footer_branch
    %16 = sbr.rel target = $region3
  $region8: #{regression_forward.1} parent=0 // loop_exit
    _

</llo_original>
